<compile_context>
chip_gen: v7x
topology: tpu7x:2x2x1
jax: 0.10.0
libtpu: 0.0.40
codegen_flags: <defaults>
</compile_context>

<pallas_src>
import functools

import jax
import jax.numpy as jnp
from jax.experimental import pallas as pl
from jax.experimental.pallas import tpu as pltpu

LANES = 128
SUBLANES = 8
TARGET_BLOCK_ELEMS = 1 << 20          # ~4 MiB per f32 input block (2-4 MiB sweet spot)
MAX_COLS = 1 << 16                    # cap on the lane dim of a block
MIN_UTIL = 0.25                       # below this, padded-dense layout is cheaper
NUM_CORES = 2                         # v7x has 2 TensorCores; clamped for small inputs
VMEM_LIMIT_BYTES = 32 * 1024 * 1024


def _round_up(x, m):
    return (x + m - 1) // m * m


def _cdiv(a, b):
    return -(-a // b)


def _focal_loss_kernel(x_ref, t_ref, out_ref, *, alpha, gamma, tile_rows, cols,
                       blocks_per_core, full_valid_rows, rem_cols, needs_mask):
    c = pl.program_id(0)   # core axis ("parallel": sharded across TCs on v7x)
    j = pl.program_id(1)   # per-core block sweep (reduction axis, "arbitrary")

    # Per-core accumulator = the resident (8, cols) output block.
    @pl.when(j == 0)
    def _init():
        out_ref[...] = jnp.zeros_like(out_ref)

    x = x_ref[...].astype(jnp.float32)   # in-kernel cast: callers may pass bf16
    t = t_ref[...].astype(jnp.float32)

    # Numerically stable binary_cross_entropy_with_logits (reduction='none'):
    #   bce = max(x, 0) - x*t + log1p(exp(-|x|))
    bce = jnp.maximum(x, 0.0) - x * t + jnp.log1p(jnp.exp(-jnp.abs(x)))
    pt = jnp.exp(-bce)
    one_minus_pt = 1.0 - pt
    if gamma == 2.0:
        focal_w = one_minus_pt * one_minus_pt        # square: no pow / NaN hazard
    elif float(gamma).is_integer() and gamma >= 0:
        w = jnp.ones_like(one_minus_pt)
        for _ in range(int(gamma)):
            w = w * one_minus_pt
        focal_w = w
    else:
        focal_w = jnp.power(jnp.maximum(one_minus_pt, 0.0), gamma)
    f_loss = alpha * focal_w * bce

    def _accum(vals):
        if tile_rows % SUBLANES == 0:
            # Full-vreg accumulator: pure VALU tree adds, no per-step XLU reduce.
            out_ref[...] += jnp.sum(
                vals.reshape(tile_rows // SUBLANES, SUBLANES, cols), axis=0)
        else:
            # Tiny single-block case (tile_rows not 8-aligned): first sublane only.
            out_ref[0:1, :] += jnp.sum(vals, axis=0, keepdims=True)

    if not needs_mask:
        _accum(f_loss)                 # every block fully valid: zero mask work
        return

    gblock = c * blocks_per_core + j   # logical (unclamped) block index
    row_start = gblock * tile_rows
    is_full = row_start + tile_rows <= full_valid_rows

    @pl.when(is_full)
    def _steady():                     # hot path: no masking
        _accum(f_loss)

    @pl.when(jnp.logical_not(is_full))
    def _tail():                       # ragged / duplicated tail blocks only
        row = jax.lax.broadcasted_iota(jnp.int32, f_loss.shape, 0)
        grow = row_start + row
        mask = grow < full_valid_rows
        if rem_cols:                   # partial last row (padded-dense fallback)
            col = jax.lax.broadcasted_iota(jnp.int32, f_loss.shape, 1)
            mask = jnp.logical_or(
                mask, jnp.logical_and(grow == full_valid_rows, col < rem_cols))
        _accum(jnp.where(mask, f_loss, 0.0))


def _choose_layout(shape, total):
    """Pick a free-reshape 2-D (rows, cols) layout; None -> pad-to-128 fallback."""
    if total % LANES == 0:
        return total // LANES, LANES
    best_util, best_cols = -1.0, None
    prod = 1
    for d in reversed(shape):          # suffix products => contiguous reshapes
        prod *= int(d)
        if prod > MAX_COLS:
            break
        rows = total // prod
        lane_util = prod / float(_round_up(prod, LANES))
        sub_util = min(rows, SUBLANES) / float(SUBLANES)
        util = lane_util * sub_util
        if util > best_util:           # ties keep the smaller cols (more rows)
            best_util, best_cols = util, prod
    if best_cols is not None and best_util >= MIN_UTIL:
        return total // best_cols, best_cols
    return None


def focal_loss(inputs, targets, *, alpha=1.0, gamma=2.0,
               target_block_elems=TARGET_BLOCK_ELEMS):
    """Focal loss with logits=True, reduce=True (mean). Returns scalar f32."""
    assert inputs.shape == targets.shape
    total = int(inputs.size)
    assert total > 0

    x = jnp.ravel(inputs)
    t = jnp.ravel(targets)

    layout = _choose_layout(inputs.shape, total)
    if layout is None:
        # TODO(synk): rare fallback (no lane-dense free reshape, e.g. huge prime
        # last dim) still pays a full jnp.pad HBM copy; a 1-D BlockSpec path
        # would remove it but needs in-kernel 1-D<->2-D relayouts.
        padded = _round_up(total, LANES)
        x = jnp.pad(x, (0, padded - total))
        t = jnp.pad(t, (0, padded - total))
        n_rows, cols = padded // LANES, LANES
    else:
        n_rows, cols = layout
    x = x.reshape(n_rows, cols)
    t = t.reshape(n_rows, cols)

    full_valid_rows, rem_cols = divmod(total, cols)

    # Block sizing: ~target_block_elems per block (~4 MiB f32), row count a
    # multiple of 8 (or the full extent); the lane dim is never tiled.
    cap = max(SUBLANES, (target_block_elems // cols) // SUBLANES * SUBLANES)
    tile_rows = n_rows if n_rows <= cap else cap
    n_blocks = _cdiv(n_rows, tile_rows)

    # Only enable the 2-core split when there is real work to split; otherwise
    # a 1-TC chip would re-stream the whole input for a masked duplicate block.
    num_cores = NUM_CORES if n_blocks >= NUM_CORES else 1
    blocks_per_core = _cdiv(n_blocks, num_cores)

    covered_rows = num_cores * blocks_per_core * tile_rows
    needs_mask = (covered_rows != full_valid_rows) or (rem_cols != 0)

    def in_index_map(c, j):
        b = c * blocks_per_core + j
        # Clamp so a core that ran out of real blocks re-reads the last one;
        # its contribution is masked to zero in-kernel.
        return (jnp.minimum(b, n_blocks - 1), 0)

    kernel = functools.partial(
        _focal_loss_kernel,
        alpha=float(alpha), gamma=float(gamma), tile_rows=tile_rows, cols=cols,
        blocks_per_core=blocks_per_core, full_valid_rows=full_valid_rows,
        rem_cols=rem_cols, needs_mask=needs_mask)

    partials = pl.pallas_call(
        kernel,
        out_shape=jax.ShapeDtypeStruct((num_cores * SUBLANES, cols), jnp.float32),
        grid_spec=pltpu.PrefetchScalarGridSpec(
            num_scalar_prefetch=0,
            grid=(num_cores, blocks_per_core),
            in_specs=[
                pl.BlockSpec((tile_rows, cols), in_index_map),
                pl.BlockSpec((tile_rows, cols), in_index_map),
            ],
            out_specs=pl.BlockSpec((SUBLANES, cols), lambda c, j: (c, 0)),
        ),
        compiler_params=pltpu.CompilerParams(
            # TODO(synk): on v7x verify "parallel" shards this axis across both
            # TensorCores; if not, switch to pltpu.CORE_PARALLEL / pl.core_map.
            dimension_semantics=("parallel", "arbitrary"),
            vmem_limit_bytes=VMEM_LIMIT_BYTES),
    )(x, t)

    # Tiny epilogue: cross-sublane / cross-lane / cross-core reduce + mean.
    return jnp.sum(partials) / jnp.float32(total)


def _focal_loss_ref(inputs, targets, alpha=1.0, gamma=2.0):
    x = inputs.astype(jnp.float32)
    t = targets.astype(jnp.float32)
    bce = jnp.maximum(x, 0.0) - x * t + jnp.log1p(jnp.exp(-jnp.abs(x)))
    pt = jnp.exp(-bce)
    return jnp.mean(alpha * (1.0 - pt) ** gamma * bce)


if __name__ == "__main__":
    key = jax.random.PRNGKey(0)

    cases = [
        # (shape, dtype, focal_loss kwargs)
        ((2, 4, 16, 16), jnp.float32, {}),                  # dense (rows,128), 1 block
        ((2, 3, 7, 19), jnp.float32, {}),                   # ragged: free suffix split
        ((5, 3), jnp.float32, {}),                          # tiny ragged: pad fallback
        ((2, 4, 32, 32), jnp.float32,                       # multi-block, 2-core split,
         {"target_block_elems": 3072}),                     # masked dup + partial tail
        ((2, 4, 16, 16), jnp.bfloat16, {}),                 # bf16 streams, f32 in-kernel
    ]
    for idx, (shape, dtype, kw) in enumerate(cases):
        k1, k2 = jax.random.split(jax.random.fold_in(key, idx))
        logits = jax.random.normal(k1, shape, dtype=jnp.float32).astype(dtype)
        targets = jax.random.bernoulli(k2, 0.5, shape).astype(dtype)
        loss = jax.block_until_ready(focal_loss(logits, targets, **kw))
        ref = jax.block_until_ready(_focal_loss_ref(logits, targets))
        assert jnp.allclose(loss, ref, rtol=1e-5, atol=1e-6), (shape, dtype, loss, ref)
    print("KERNEL_OK")
</pallas_src>

<mosaic_0001>
module attributes {stable_mosaic.version = 11 : i64} {
  func.func @_focal_loss_kernel(%arg0: i32, %arg1: i32, %arg2: memref<16x128xf32, #tpu.memory_space<vmem>>, %arg3: memref<16x128xf32, #tpu.memory_space<vmem>>, %arg4: memref<8x128xf32, #tpu.memory_space<vmem>>) attributes {dimension_semantics = [#tpu.dimension_semantics<parallel>, #tpu.dimension_semantics<arbitrary>], iteration_bounds = array<i64: 1, 1>, scalar_prefetch = 0 : i64, scratch_operands = 0 : i64, tpu.core_type = #tpu.core_type<tc>, window_params = [{transform_indices = @transform_0, window_bounds = array<i64: 16, 128>}, {transform_indices = @transform_1, window_bounds = array<i64: 16, 128>}, {transform_indices = @transform_2, window_bounds = array<i64: 8, 128>}]} {
    %c0_i32 = arith.constant 0 : i32
    %0 = arith.cmpi eq, %arg1, %c0_i32 : i32
    %1 = arith.extui %0 : i1 to i32
    %c0_i32_0 = arith.constant 0 : i32
    %2 = arith.cmpi ne, %1, %c0_i32_0 : i32
    scf.if %2 {
      %cst_13 = arith.constant 0.000000e+00 : f32
      %29 = vector.broadcast %cst_13 : f32 to vector<8x128xf32>
      %c0_14 = arith.constant 0 : index
      %c0_15 = arith.constant 0 : index
      %30 = vector.load %arg4[%c0_14, %c0_15] : memref<8x128xf32, #tpu.memory_space<vmem>>, vector<8x128xf32>
      tpu.vector_store %arg4[%c0_14, %c0_15], %29 {strides = array<i32>} : memref<8x128xf32, #tpu.memory_space<vmem>>, vector<8x128xf32>,
    } else {
    }
    %c0 = arith.constant 0 : index
    %c0_1 = arith.constant 0 : index
    %3 = vector.load %arg2[%c0, %c0_1] : memref<16x128xf32, #tpu.memory_space<vmem>>, vector<16x128xf32>
    %c0_2 = arith.constant 0 : index
    %c0_3 = arith.constant 0 : index
    %4 = vector.load %arg3[%c0_2, %c0_3] : memref<16x128xf32, #tpu.memory_space<vmem>>, vector<16x128xf32>
    %cst = arith.constant 0.000000e+00 : f32
    %5 = vector.broadcast %cst : f32 to vector<16x128xf32>
    %6 = arith.maximumf %3, %5 : vector<16x128xf32>
    %7 = arith.mulf %3, %4 : vector<16x128xf32>
    %8 = arith.subf %6, %7 : vector<16x128xf32>
    %9 = math.absf %3 : vector<16x128xf32>
    %cst_4 = arith.constant 0.000000e+00 : f32
    %10 = vector.broadcast %cst_4 : f32 to vector<16x128xf32>
    %11 = arith.subf %10, %9 : vector<16x128xf32>
    %12 = math.exp %11 : vector<16x128xf32>
    %13 = math.log1p %12 : vector<16x128xf32>
    %14 = arith.addf %8, %13 : vector<16x128xf32>
    %cst_5 = arith.constant 0.000000e+00 : f32
    %15 = vector.broadcast %cst_5 : f32 to vector<16x128xf32>
    %16 = arith.subf %15, %14 : vector<16x128xf32>
    %17 = math.exp %16 : vector<16x128xf32>
    %cst_6 = arith.constant 1.000000e+00 : f32
    %18 = vector.broadcast %cst_6 : f32 to vector<16x128xf32>
    %19 = arith.subf %18, %17 : vector<16x128xf32>
    %20 = arith.mulf %19, %19 : vector<16x128xf32>
    %cst_7 = arith.constant 1.000000e+00 : f32
    %21 = vector.broadcast %cst_7 : f32 to vector<16x128xf32>
    %22 = arith.mulf %21, %20 : vector<16x128xf32>
    %23 = arith.mulf %22, %14 : vector<16x128xf32>
    %c0_8 = arith.constant 0 : index
    %c0_9 = arith.constant 0 : index
    %24 = vector.load %arg4[%c0_8, %c0_9] : memref<8x128xf32, #tpu.memory_space<vmem>>, vector<8x128xf32>
    %25 = vector.shape_cast %23 : vector<16x128xf32> to vector<2x8x128xf32>
    %cst_10 = arith.constant dense<0.000000e+00> : vector<8x128xf32>
    %26 = vector.multi_reduction <add>, %25, %cst_10 [0] : vector<2x8x128xf32> to vector<8x128xf32>
    %27 = arith.addf %24, %26 : vector<8x128xf32>
    %c0_11 = arith.constant 0 : index
    %c0_12 = arith.constant 0 : index
    %28 = vector.load %arg4[%c0_11, %c0_12] : memref<8x128xf32, #tpu.memory_space<vmem>>, vector<8x128xf32>
    tpu.vector_store %arg4[%c0_11, %c0_12], %27 {strides = array<i32>} : memref<8x128xf32, #tpu.memory_space<vmem>>, vector<8x128xf32>,
    return
  }
  func.func @transform_0(%arg0: i32, %arg1: i32) -> (i32, i32) {
    %c1_i32 = arith.constant 1 : i32
    %0 = arith.muli %arg0, %c1_i32 : i32
    %1 = arith.addi %0, %arg1 : i32
    %c0_i32 = arith.constant 0 : i32
    %2 = arith.minsi %1, %c0_i32 : i32
    %c0_i32_0 = arith.constant 0 : i32
    %c0_i32_1 = arith.constant 0 : i32
    return %2, %c0_i32_0 : i32, i32
  }
  func.func @transform_1(%arg0: i32, %arg1: i32) -> (i32, i32) {
    %c1_i32 = arith.constant 1 : i32
    %0 = arith.muli %arg0, %c1_i32 : i32
    %1 = arith.addi %0, %arg1 : i32
    %c0_i32 = arith.constant 0 : i32
    %2 = arith.minsi %1, %c0_i32 : i32
    %c0_i32_0 = arith.constant 0 : i32
    %c0_i32_1 = arith.constant 0 : i32
    return %2, %c0_i32_0 : i32, i32
  }
  func.func @transform_2(%arg0: i32, %arg1: i32) -> (i32, i32) {
    %c0_i32 = arith.constant 0 : i32
    %c0_i32_0 = arith.constant 0 : i32
    return %arg0, %c0_i32 : i32, i32
  }
}

</mosaic_0001>

<llo_original>
// kernel: tpu_custom_call.1
$region0: #{tpu_custom_call.1}
  #allocation0 [shape = 'u32[]', space=smem, size = 0x4, offset = 0x4, fixed_abs, tag = 'smem constant byte address 0x4 - core index']
  #allocation1 [shape = 'u32[144,128]{1,0:T(1,128)}', space=vmem, size = 0x12000, scoped, tag = 'internal scratch']
  %s0 = inlined_call_operand.hbm [shape: f32[16,128], index: 0, kind: input, shape index: {}]
  %s1 = inlined_call_operand.hbm [shape: f32[16,128], index: 1, kind: input, shape index: {}]
  %s2 = inlined_call_operand.hbm [shape: f32[8,128], index: 2, kind: output, shape index: {}]
  %s3 = sld [smem:[#allocation0]]
  $region30: #{tpu_custom_call.1} parent=0
    _
  %s5 = ssub.s32 1, %s3
  %s6 = scalar_select 0, %s5, %s3
  $region1: #{tpu_custom_call.1} parent=0
    #allocation2 [shape = 'u8[8192]{0}', space=vmem, size = 0x2000, scoped, tag = 'input window, operand 0, single buffered']
    #allocation3 [shape = 's32[1]{0}', space=sflag, size = 0x4, scoped, tag = 'scoped memory for tpu_custom_call.1']
    #allocation4 [shape = 's32[1]{0}', space=sflag, size = 0x4, scoped, tag = 'scoped memory for tpu_custom_call.1']
    #allocation5 [shape = 'u8[8192]{0}', space=vmem, size = 0x2000, scoped, tag = 'input window, operand 1, single buffered']
    #allocation6 [shape = 's32[1]{0}', space=sflag, size = 0x4, scoped, tag = 'scoped memory for tpu_custom_call.1']
    #allocation7 [shape = 'u8[4096]{0}', space=vmem, size = 0x1000, scoped, tag = 'output window, operand 0, single buffered']
    %7 = vsyncpa [#allocation3], 0
    %8 = vsyncpa [#allocation6], 0
    %9 = vsyncpa [#allocation4], 0
    // Predicated region
    $region2: #{tpu_custom_call.1} parent=1 // pred_check
      _
    $region3: #{tpu_custom_call.1} parent=1 // pred_check_branch
      %11 = sbr.rel (0) target = $region5
    $region4: #{tpu_custom_call.1} parent=1 // pred_region
      %s12 = sadd.s32 0, 0
      %p13 = scmp.lt.s32.totalorder %s12, 0
      %s14 = scalar_select %p13, %s12, 0
      %s15 = smul.u32 2, %s14
      %s17 = ssub.s32 256, 256
      %18 = vsyncadd [#allocation3], %s17
      %s19 = smul.addr %s15, 128
      %s20 = scalar_lea.hbm %s0, %s19
      %s21 = sshll.u32 [#allocation2], 4
      %s22 = int_to_ptr.vmem [resolvable:$true] %s21
      %27 = dma.hbm_to_vmem [thread:$0]  %s20, 256, %s22, [#allocation3], 128, 128, 8
    $region5: #{tpu_custom_call.1} parent=1 // pred_fallthru
      _
    // Predicated region
    $region6: #{tpu_custom_call.1} parent=1 // pred_check
      _
    $region7: #{tpu_custom_call.1} parent=1 // pred_check_branch
      %29 = sbr.rel (0) target = $region9
    $region8: #{tpu_custom_call.1} parent=1 // pred_region
      %s30 = sadd.s32 0, 0
      %p31 = scmp.lt.s32.totalorder %s30, 0
      %s32 = scalar_select %p31, %s30, 0
      %s33 = smul.u32 2, %s32
      %s35 = ssub.s32 256, 256
      %36 = vsyncadd [#allocation6], %s35
      %s37 = smul.addr %s33, 128
      %s38 = scalar_lea.hbm %s1, %s37
      %s39 = sshll.u32 [#allocation5], 4
      %s40 = int_to_ptr.vmem [resolvable:$true] %s39
      %45 = dma.hbm_to_vmem [thread:$0]  %s38, 256, %s40, [#allocation6], 128, 128, 8
    $region9: #{tpu_custom_call.1} parent=1 // pred_fallthru
      _
    // Predicated region
    $region10: #{tpu_custom_call.1} parent=1 // pred_check
      _
    $region11: #{tpu_custom_call.1} parent=1 // pred_check_branch
      %47 = sbr.rel (0) target = $region13
    $region12: #{tpu_custom_call.1} parent=1 // pred_region
      %48 = dma.done [#allocation3], 256
    $region13: #{tpu_custom_call.1} parent=1 // pred_fallthru
      _
    // Predicated region
    $region14: #{tpu_custom_call.1} parent=1 // pred_check
      _
    $region15: #{tpu_custom_call.1} parent=1 // pred_check_branch
      %50 = sbr.rel (0) target = $region17
    $region16: #{tpu_custom_call.1} parent=1 // pred_region
      %51 = dma.done [#allocation6], 256
    $region17: #{tpu_custom_call.1} parent=1 // pred_fallthru
      _
    %s52 = sadd.s32 0, 0
    %p53 = scmp.lt.s32.totalorder %s52, 0
    %s54 = scalar_select %p53, %s52, 0
    %s55 = smul.u32 2, %s54
    %s56 = sadd.s32 0, 0
    %p57 = scmp.lt.s32.totalorder %s56, 0
    %s58 = scalar_select %p57, %s56, 0
    %s59 = smul.u32 2, %s58
    %p60 = scmp.eq.s32.totalorder 0, 0
    // Predicated region
    $region18: #{tpu_custom_call.1} parent=1 // pred_check
      %p61 = pneg %p60
    $region19: #{tpu_custom_call.1} parent=1 // pred_check_branch
      %63 = sbr.rel (%p61) target = $region21
    $region20: #{tpu_custom_call.1} parent=1 // pred_region
      %64 = vst [vmem:[#allocation7] sm:$0xff] 0.0
    $region21: #{tpu_custom_call.1} parent=1 // pred_fallthru
      _
    %v65 = vld [vmem:[#allocation2] sm:$0xff]
    %v66 = vld [vmem:[#allocation2 + $0x8] sm:$0xff]
    %v67 = vld [vmem:[#allocation5] sm:$0xff]
    %v68 = vld [vmem:[#allocation5 + $0x8] sm:$0xff]
    %v69 = vmax.f32 %v65, 0.0
    %v70 = vmax.f32 %v66, 0.0
    %v71 = vmul.f32 %v65, %v67
    %v72 = vmul.f32 %v66, %v68
    %v73 = vsub.f32 %v69, %v71
    %v74 = vsub.f32 %v70, %v72
    %v75 = vand.u32 2147483647, %v65
    %v76 = vand.u32 2147483647, %v66
    %v77 = vsub.f32 0.0, %v75
    %v78 = vsub.f32 0.0, %v76
    %v79 = vmul.f32 %v77, 1.442695
    %v80 = vpow.pop %v79
    %v81 = vmul.f32 %v78, 1.442695
    %v82 = vpow.pop %v81
    %v83 = vadd.f32 %v80, 1.0
    %v84 = vlog2.pop %v83
    %v85 = vmul.f32 %v84, 0.6931472
    %v86 = vmul.f32 -0.5, %v80
    %v87 = vadd.f32 %v86, 1.0
    %v88 = vmul.f32 %v87, %v80
    %v89 = vand.u32 2147483647, %v80
    %vm90 = vcmp.lt.f32.partialorder %v89, 0.0004427343
    %v91 = vsel %vm90, %v88, %v85
    %v92 = vadd.f32 %v82, 1.0
    %v93 = vlog2.pop %v92
    %v94 = vmul.f32 %v93, 0.6931472
    %v95 = vmul.f32 -0.5, %v82
    %v96 = vadd.f32 %v95, 1.0
    %v97 = vmul.f32 %v96, %v82
    %v98 = vand.u32 2147483647, %v82
    %vm99 = vcmp.lt.f32.partialorder %v98, 0.0004427343
    %v100 = vsel %vm99, %v97, %v94
    %v101 = vadd.f32 %v73, %v91
    %v102 = vadd.f32 %v74, %v100
    %v103 = vsub.f32 0.0, %v101
    %v104 = vsub.f32 0.0, %v102
    %v105 = vmul.f32 %v103, 1.442695
    %v106 = vpow.pop %v105
    %v107 = vmul.f32 %v104, 1.442695
    %v108 = vpow.pop %v107
    %v109 = vsub.f32 1.0, %v106
    %v110 = vsub.f32 1.0, %v108
    %v111 = vmul.f32 %v109, %v109
    %v112 = vmul.f32 %v110, %v110
    %v113 = vmul.f32 %v111, %v101
    %v114 = vmul.f32 %v112, %v102
    %v115 = vld [vmem:[#allocation7] sm:$0xff]
    %v116 = vadd.f32 %v113, %v114
    %v117 = vadd.f32 %v115, %v116
    %118 = vst [vmem:[#allocation7] sm:$0xff] %v117
    // Predicated region
    $region22: #{tpu_custom_call.1} parent=1 // pred_check
      _
    $region23: #{tpu_custom_call.1} parent=1 // pred_check_branch
      %120 = sbr.rel (0) target = $region25
    $region24: #{tpu_custom_call.1} parent=1 // pred_region
      %s122 = ssub.s32 128, 128
      %123 = vsyncadd [#allocation4], %s122
      %s125 = sshll.u32 [#allocation7], 4
      %s126 = int_to_ptr.vmem [resolvable:$true] %s125
      %128 = dma.vmem_to_hbm [thread:$0]  %s126, 128, %s2, [#allocation4]
    $region25: #{tpu_custom_call.1} parent=1 // pred_fallthru
      _
    // Predicated region
    $region26: #{tpu_custom_call.1} parent=1 // pred_check
      _
    $region27: #{tpu_custom_call.1} parent=1 // pred_check_branch
      %130 = sbr.rel (0) target = $region29
    $region28: #{tpu_custom_call.1} parent=1 // pred_region
      %131 = dma.done [#allocation4], 128
    $region29: #{tpu_custom_call.1} parent=1 // pred_fallthru
      _
    %132 = vsyncpa [#allocation3], 1
    %133 = vsyncpa [#allocation6], 1
    %134 = vsyncpa [#allocation4], 1

</llo_original>
